<compile_context>
chip_gen: v7x
topology: tpu7x:2x2x1
jax: 0.10.0
libtpu: 0.0.40
codegen_flags: <defaults>
</compile_context>

<pallas_src>
import functools

import jax
import jax.numpy as jnp
from jax.experimental import pallas as pl
from jax.experimental.pallas import tpu as pltpu

F32 = jnp.float32
BF16 = jnp.bfloat16
VMEM_LIMIT_BYTES = 64 * 1024 * 1024   # explicit scoped-VMEM limit (safe across v5e/v6e/v7x)


def _ln(x, eps):
    """LayerNorm over last axis (no affine), f32 statistics."""
    mean = jnp.mean(x, axis=-1, keepdims=True)
    var = jnp.mean(jnp.square(x - mean), axis=-1, keepdims=True)
    return (x - mean) * jax.lax.rsqrt(var + eps)


def _mm(a, w):
    """MXU matmul: bf16 operands, f32 accumulation."""
    return jnp.dot(a.astype(BF16), w.astype(BF16), preferred_element_type=F32)


def _mm_nt(a, b):
    """a @ b.T by contracting last dims of both (no transpose op emitted)."""
    return jax.lax.dot_general(
        a.astype(BF16), b.astype(BF16),
        dimension_numbers=(((1,), (1,)), ((), ())),
        preferred_element_type=F32)


# --------------------- embedding + embed LayerNorm kernel ---------------------
def embed_kernel(x_ref, wemb_ref, bemb_ref, g_ref, b_ref, o_ref):
    x = x_ref[0]                                           # (S, F) f32
    # feature weights are pre-folded into wemb (diag(fw) @ W) outside the kernel
    emb = _mm(x, wemb_ref[...]) + bemb_ref[...]            # (S, H) f32
    o_ref[0] = _ln(emb, 1e-5) * g_ref[...] + b_ref[...]    # nn.LayerNorm(hidden) affine


# ----------------- fused depth loop of DiT-style transformer blocks -----------------
def blocks_kernel(x_ref, mod_ref, wqkv_ref, bqkv_ref, wproj_ref, bproj_ref,
                  wfc1_ref, bfc1_ref, wfc2_ref, bfc2_ref,
                  o_ref, attn_buf, *, hidden, num_heads):
    H = hidden
    hd = H // num_heads
    d = pl.program_id(1)

    # Load the activation into the resident output block once per batch element;
    # it stays in VMEM across the whole depth axis (output block index is constant in d).
    @pl.when(d == 0)
    def _():
        o_ref[0] = x_ref[0]

    x = o_ref[0]                                           # (S, H) f32 residual stream
    mod = mod_ref[0, 0]                                    # (6, H) f32 precomputed adaLN rows
    shift_msa = mod[0:1]
    one_plus_scale_msa = 1.0 + mod[1:2]                    # hoisted once
    gate_msa = mod[2:3]
    shift_mlp = mod[3:4]
    one_plus_scale_mlp = 1.0 + mod[4:5]
    gate_mlp = mod[5:6]

    # --- attention branch: x + gate * proj(attn(modulate(norm1(x)))) ---
    xm = _ln(x, 1e-6) * one_plus_scale_msa + shift_msa
    qkv = _mm(xm, wqkv_ref[0]) + bqkv_ref[0]               # (S, 3H) f32, [q|k|v] layout
    scale = 1.0 / (hd ** 0.5)
    # TODO(synk): replace with a head-gridded flash-attention loop for large S.
    for h in range(num_heads):                             # static unroll over heads
        qh = qkv[:, h * hd:(h + 1) * hd]
        kh = qkv[:, H + h * hd:H + (h + 1) * hd]
        vh = qkv[:, 2 * H + h * hd:2 * H + (h + 1) * hd]
        s = _mm_nt(qh, kh) * scale                         # (S, S) f32, no k transpose
        s = s - jnp.max(s, axis=-1, keepdims=True)
        p = jnp.exp(s)
        p = p * pl.reciprocal(jnp.sum(p, axis=-1, keepdims=True), approx=True)
        attn_buf[:, h * hd:(h + 1) * hd] = _mm(p, vh)      # write head slice; no concat
    attn = _mm(attn_buf[...], wproj_ref[0]) + bproj_ref[0]  # fused full-width projection
    x = x + gate_msa * attn

    # --- MLP branch: x + gate * fc2(gelu(fc1(modulate(norm2(x))))) ---
    xm2 = _ln(x, 1e-6) * one_plus_scale_mlp + shift_mlp
    h1 = _mm(xm2, wfc1_ref[0]) + bfc1_ref[0]
    h1 = jax.nn.gelu(h1, approximate=False)                # exact erf GELU (torch nn.GELU)
    x = x + gate_mlp * (_mm(h1, wfc2_ref[0]) + bfc2_ref[0])

    o_ref[0] = x


# ------------------------------ FinalLayer kernel ------------------------------
def head_kernel(x_ref, mod_ref, wlin_ref, blin_ref, o_ref):
    x = x_ref[0]                                           # (S, H)
    mod = mod_ref[0]                                       # (2, H): [shift, scale]
    xm = _ln(x, 1e-6) * (1.0 + mod[1:2]) + mod[0:1]
    # lane-padded output (padding columns of wlin are zero; sliced off in the wrapper)
    o_ref[0] = _mm(xm, wlin_ref[...]) + blin_ref[...]


# ------------------------------ wrappers / glue ------------------------------
def stormer_forward(x, params, *, hidden, num_heads, depth, out_dim):
    B, S, F_ = x.shape
    H = hidden
    mlp_hidden = params["w_fc1"].shape[-1]
    out_pad = params["head_w_lin"].shape[-1]

    cp1 = pltpu.CompilerParams(dimension_semantics=("parallel",),
                               vmem_limit_bytes=VMEM_LIMIT_BYTES)

    # 1) feature-weighted embedding + embed LayerNorm
    #    (per-feature scaling folded into the embedding matrix: (x*fw)@W == x@(diag(fw)W))
    w_emb_eff = (params["feat_w"] * params["w_emb"]).astype(BF16)
    x_emb = pl.pallas_call(
        embed_kernel,
        out_shape=jax.ShapeDtypeStruct((B, S, H), F32),
        grid=(B,),
        in_specs=[
            pl.BlockSpec((1, S, F_), lambda b: (b, 0, 0)),
            pl.BlockSpec((F_, H), lambda b: (0, 0)),
            pl.BlockSpec((1, H), lambda b: (0, 0)),
            pl.BlockSpec((1, H), lambda b: (0, 0)),
            pl.BlockSpec((1, H), lambda b: (0, 0)),
        ],
        out_specs=pl.BlockSpec((1, S, H), lambda b: (b, 0, 0)),
        compiler_params=cp1,
    )(x, w_emb_eff, params["b_emb"], params["ln_g"], params["ln_b"])

    # cls_token = x[:, 0]; precompute all adaLN modulations in plain XLA
    # (hoists the degenerate (1,H)@(H,6H) matmul out of the per-batch kernels).
    cls = x_emb[:, 0, :]                                   # (B, H)
    silu_cls = cls * jax.nn.sigmoid(cls)
    mod_all = (jnp.einsum("bh,dhm->bdm", silu_cls, params["w_ada"])
               + params["b_ada"][None, :, 0, :])           # (B, depth, 6H)
    mod_all = mod_all.reshape(B, depth, 6, H)
    mod_head = (jnp.dot(silu_cls, params["head_w_ada"])
                + params["head_b_ada"]).reshape(B, 2, H)   # (B, 2, H)

    # 2) fused depth loop over DiT blocks: grid=(B, depth), activation resident across depth
    x_blocks = pl.pallas_call(
        functools.partial(blocks_kernel, hidden=H, num_heads=num_heads),
        out_shape=jax.ShapeDtypeStruct((B, S, H), F32),
        grid=(B, depth),
        in_specs=[
            pl.BlockSpec((1, S, H), lambda b, d: (b, 0, 0)),           # x (fetched once per b)
            pl.BlockSpec((1, 1, 6, H), lambda b, d: (b, d, 0, 0)),     # adaLN modulation rows
            pl.BlockSpec((1, H, 3 * H), lambda b, d: (d, 0, 0)),       # w_qkv   (bf16, streamed)
            pl.BlockSpec((1, 1, 3 * H), lambda b, d: (d, 0, 0)),       # b_qkv
            pl.BlockSpec((1, H, H), lambda b, d: (d, 0, 0)),           # w_proj  (bf16)
            pl.BlockSpec((1, 1, H), lambda b, d: (d, 0, 0)),           # b_proj
            pl.BlockSpec((1, H, mlp_hidden), lambda b, d: (d, 0, 0)),  # w_fc1   (bf16)
            pl.BlockSpec((1, 1, mlp_hidden), lambda b, d: (d, 0, 0)),  # b_fc1
            pl.BlockSpec((1, mlp_hidden, H), lambda b, d: (d, 0, 0)),  # w_fc2   (bf16)
            pl.BlockSpec((1, 1, H), lambda b, d: (d, 0, 0)),           # b_fc2
        ],
        out_specs=pl.BlockSpec((1, S, H), lambda b, d: (b, 0, 0)),
        scratch_shapes=[pltpu.VMEM((S, H), F32)],                      # per-head attn assembly
        compiler_params=pltpu.CompilerParams(
            dimension_semantics=("parallel", "arbitrary"),
            vmem_limit_bytes=VMEM_LIMIT_BYTES),
    )(x_emb, mod_all, params["w_qkv"], params["b_qkv"], params["w_proj"],
      params["b_proj"], params["w_fc1"], params["b_fc1"], params["w_fc2"],
      params["b_fc2"])

    # 3) FinalLayer (lane-padded output, sliced back to out_dim)
    out_p = pl.pallas_call(
        head_kernel,
        out_shape=jax.ShapeDtypeStruct((B, S, out_pad), F32),
        grid=(B,),
        in_specs=[
            pl.BlockSpec((1, S, H), lambda b: (b, 0, 0)),
            pl.BlockSpec((1, 2, H), lambda b: (b, 0, 0)),
            pl.BlockSpec((H, out_pad), lambda b: (0, 0)),
            pl.BlockSpec((1, out_pad), lambda b: (0, 0)),
        ],
        out_specs=pl.BlockSpec((1, S, out_pad), lambda b: (b, 0, 0)),
        compiler_params=cp1,
    )(x_blocks, mod_head, params["head_w_lin"], params["head_b_lin"])
    return out_p[:, :, :out_dim]


def init_params(key, *, variables, met_weights, hidden, depth, mlp_ratio, patch_size):
    F_ = len(variables)
    H = hidden
    mlp_hidden = int(hidden * mlp_ratio)
    out_dim = patch_size * patch_size * F_
    out_pad = ((out_dim + 127) // 128) * 128               # lane-dense head output width

    keys = jax.random.split(key, 16)
    kit = iter(keys)

    def tn(shape, std=0.02):
        # trunc_normal(std=0.02) used by _basic_init
        return jax.random.truncated_normal(next(kit), -2.0, 2.0, shape, F32) * std

    head_w_lin = tn((H, out_dim))
    head_w_lin = jnp.pad(head_w_lin, ((0, 0), (0, out_pad - out_dim)))

    params = {
        "feat_w": jnp.asarray([met_weights.get(v, 1.0) for v in variables],
                              F32).reshape(F_, 1),
        "w_emb": tn((F_, H)),
        "b_emb": jnp.zeros((1, H), F32),
        "ln_g": jnp.ones((1, H), F32),
        "ln_b": jnp.zeros((1, H), F32),
        # per-block weights stacked along depth; matmul weights stored in bf16
        "w_ada": jnp.zeros((depth, H, 6 * H), F32),        # adaLN-Zero: explicit zero init
        "b_ada": jnp.zeros((depth, 1, 6 * H), F32),
        "w_qkv": tn((depth, H, 3 * H)).astype(BF16),
        "b_qkv": jnp.zeros((depth, 1, 3 * H), F32),
        "w_proj": tn((depth, H, H)).astype(BF16),
        "b_proj": jnp.zeros((depth, 1, H), F32),
        "w_fc1": tn((depth, H, mlp_hidden)).astype(BF16),
        "b_fc1": jnp.zeros((depth, 1, mlp_hidden), F32),
        "w_fc2": tn((depth, mlp_hidden, H)).astype(BF16),
        "b_fc2": jnp.zeros((depth, 1, H), F32),
        # FinalLayer: adaLN + output Linear get trunc_normal via _basic_init
        "head_w_ada": tn((H, 2 * H)),
        "head_b_ada": jnp.zeros((1, 2 * H), F32),
        "head_w_lin": head_w_lin.astype(BF16),
        "head_b_lin": jnp.zeros((1, out_pad), F32),
    }
    return params, out_dim


if __name__ == "__main__":
    # Small, forward-consistent shapes: x is (B, T+1, F) with a CLS row at index 0.
    B, S = 2, 8
    variables = ["t2m", "u10", "v10", "msl"]
    met_weights = {"t2m": 1.0, "u10": 0.8, "v10": 0.8, "msl": 0.5}
    hidden, depth, num_heads, mlp_ratio, patch_size = 32, 2, 4, 4.0, 2

    key = jax.random.PRNGKey(0)
    kx, kp = jax.random.split(key)
    x = jax.random.normal(kx, (B, S, len(variables)), F32)

    params, out_dim = init_params(kp, variables=variables, met_weights=met_weights,
                                  hidden=hidden, depth=depth, mlp_ratio=mlp_ratio,
                                  patch_size=patch_size)

    out = stormer_forward(x, params, hidden=hidden, num_heads=num_heads,
                          depth=depth, out_dim=out_dim)
    out = jax.block_until_ready(out)
    assert out.shape == (B, S, patch_size * patch_size * len(variables))
    assert jnp.all(jnp.isfinite(out))
    print("KERNEL_OK")
</pallas_src>

<mosaic_0001>
module attributes {stable_mosaic.version = 11 : i64} {
  func.func @embed_kernel(%arg0: i32, %arg1: memref<1x8x4xf32, #tpu.memory_space<vmem>>, %arg2: memref<4x32xbf16, #tpu.memory_space<vmem>>, %arg3: memref<1x32xf32, #tpu.memory_space<vmem>>, %arg4: memref<1x32xf32, #tpu.memory_space<vmem>>, %arg5: memref<1x32xf32, #tpu.memory_space<vmem>>, %arg6: memref<1x8x32xf32, #tpu.memory_space<vmem>>) attributes {dimension_semantics = [#tpu.dimension_semantics<parallel>], iteration_bounds = array<i64: 2>, scalar_prefetch = 0 : i64, scratch_operands = 0 : i64, tpu.core_type = #tpu.core_type<tc>, window_params = [{transform_indices = @transform_0, window_bounds = array<i64: 1, 8, 4>}, {pipeline_mode = #tpu.pipeline_mode<synchronous>, transform_indices = @transform_1, window_bounds = array<i64: 4, 32>}, {pipeline_mode = #tpu.pipeline_mode<synchronous>, transform_indices = @transform_2, window_bounds = array<i64: 1, 32>}, {pipeline_mode = #tpu.pipeline_mode<synchronous>, transform_indices = @transform_3, window_bounds = array<i64: 1, 32>}, {pipeline_mode = #tpu.pipeline_mode<synchronous>, transform_indices = @transform_4, window_bounds = array<i64: 1, 32>}, {transform_indices = @transform_5, window_bounds = array<i64: 1, 8, 32>}]} {
    %c0 = arith.constant 0 : index
    %c0_0 = arith.constant 0 : index
    %c0_1 = arith.constant 0 : index
    %0 = vector.load %arg1[%c0, %c0_0, %c0_1] : memref<1x8x4xf32, #tpu.memory_space<vmem>>, vector<1x8x4xf32>
    %1 = vector.shape_cast %0 : vector<1x8x4xf32> to vector<8x4xf32>
    %c0_2 = arith.constant 0 : index
    %c0_3 = arith.constant 0 : index
    %2 = vector.load %arg2[%c0_2, %c0_3] : memref<4x32xbf16, #tpu.memory_space<vmem>>, vector<4x32xbf16>
    %3 = arith.truncf %1 : vector<8x4xf32> to vector<8x4xbf16>
    %cst = arith.constant dense<0.000000e+00> : vector<8x32xf32>
    %4 = tpu.matmul %3, %2, %cst {dimension_numbers = #tpu.dot_dimension_numbers<[1], [0], [0], [1], [0, 0, 1, 1], [], []>} : vector<8x4xbf16>, vector<4x32xbf16>, vector<8x32xf32> -> vector<8x32xf32>
    %c0_4 = arith.constant 0 : index
    %c0_5 = arith.constant 0 : index
    %5 = vector.load %arg3[%c0_4, %c0_5] : memref<1x32xf32, #tpu.memory_space<vmem>>, vector<1x32xf32>
    %6 = vector.broadcast %5 : vector<1x32xf32> to vector<8x32xf32>
    %7 = arith.addf %4, %6 : vector<8x32xf32>
    %cst_6 = arith.constant dense<0.000000e+00> : vector<8xf32>
    %8 = vector.multi_reduction <add>, %7, %cst_6 [1] : vector<8x32xf32> to vector<8xf32>
    %9 = vector.shape_cast %8 : vector<8xf32> to vector<8x1xf32>
    %cst_7 = arith.constant 3.200000e+01 : f32
    %10 = vector.broadcast %cst_7 : f32 to vector<8x1xf32>
    %11 = arith.divf %9, %10 : vector<8x1xf32>
    %12 = vector.broadcast %11 : vector<8x1xf32> to vector<8x32xf32>
    %13 = arith.subf %7, %12 : vector<8x32xf32>
    %14 = arith.mulf %13, %13 : vector<8x32xf32>
    %cst_8 = arith.constant dense<0.000000e+00> : vector<8xf32>
    %15 = vector.multi_reduction <add>, %14, %cst_8 [1] : vector<8x32xf32> to vector<8xf32>
    %16 = vector.shape_cast %15 : vector<8xf32> to vector<8x1xf32>
    %cst_9 = arith.constant 3.200000e+01 : f32
    %17 = vector.broadcast %cst_9 : f32 to vector<8x1xf32>
    %18 = arith.divf %16, %17 : vector<8x1xf32>
    %19 = vector.broadcast %11 : vector<8x1xf32> to vector<8x32xf32>
    %20 = arith.subf %7, %19 : vector<8x32xf32>
    %cst_10 = arith.constant 9.99999974E-6 : f32
    %21 = vector.broadcast %cst_10 : f32 to vector<8x1xf32>
    %22 = arith.addf %18, %21 : vector<8x1xf32>
    %23 = math.rsqrt %22 : vector<8x1xf32>
    %24 = vector.broadcast %23 : vector<8x1xf32> to vector<8x32xf32>
    %25 = arith.mulf %20, %24 : vector<8x32xf32>
    %c0_11 = arith.constant 0 : index
    %c0_12 = arith.constant 0 : index
    %26 = vector.load %arg4[%c0_11, %c0_12] : memref<1x32xf32, #tpu.memory_space<vmem>>, vector<1x32xf32>
    %27 = vector.broadcast %26 : vector<1x32xf32> to vector<8x32xf32>
    %28 = arith.mulf %25, %27 : vector<8x32xf32>
    %c0_13 = arith.constant 0 : index
    %c0_14 = arith.constant 0 : index
    %29 = vector.load %arg5[%c0_13, %c0_14] : memref<1x32xf32, #tpu.memory_space<vmem>>, vector<1x32xf32>
    %30 = vector.broadcast %29 : vector<1x32xf32> to vector<8x32xf32>
    %31 = arith.addf %28, %30 : vector<8x32xf32>
    %c0_15 = arith.constant 0 : index
    %c0_16 = arith.constant 0 : index
    %c0_17 = arith.constant 0 : index
    %32 = vector.load %arg6[%c0_15, %c0_16, %c0_17] : memref<1x8x32xf32, #tpu.memory_space<vmem>>, vector<1x8x32xf32>
    %33 = vector.shape_cast %32 : vector<1x8x32xf32> to vector<8x32xf32>
    %34 = vector.shape_cast %31 : vector<8x32xf32> to vector<1x8x32xf32>
    tpu.vector_store %arg6[%c0_15, %c0_16, %c0_17], %34 {strides = array<i32>} : memref<1x8x32xf32, #tpu.memory_space<vmem>>, vector<1x8x32xf32>,
    return
  }
  func.func @transform_0(%arg0: i32) -> (i32, i32, i32) {
    %c0_i32 = arith.constant 0 : i32
    %c0_i32_0 = arith.constant 0 : i32
    %c0_i32_1 = arith.constant 0 : i32
    return %arg0, %c0_i32, %c0_i32_0 : i32, i32, i32
  }
  func.func @transform_1(%arg0: i32) -> (i32, i32) {
    %c0_i32 = arith.constant 0 : i32
    %c0_i32_0 = arith.constant 0 : i32
    %c0_i32_1 = arith.constant 0 : i32
    return %c0_i32, %c0_i32_0 : i32, i32
  }
  func.func @transform_2(%arg0: i32) -> (i32, i32) {
    %c0_i32 = arith.constant 0 : i32
    %c0_i32_0 = arith.constant 0 : i32
    %c0_i32_1 = arith.constant 0 : i32
    return %c0_i32, %c0_i32_0 : i32, i32
  }
  func.func @transform_3(%arg0: i32) -> (i32, i32) {
    %c0_i32 = arith.constant 0 : i32
    %c0_i32_0 = arith.constant 0 : i32
    %c0_i32_1 = arith.constant 0 : i32
    return %c0_i32, %c0_i32_0 : i32, i32
  }
  func.func @transform_4(%arg0: i32) -> (i32, i32) {
    %c0_i32 = arith.constant 0 : i32
    %c0_i32_0 = arith.constant 0 : i32
    %c0_i32_1 = arith.constant 0 : i32
    return %c0_i32, %c0_i32_0 : i32, i32
  }
  func.func @transform_5(%arg0: i32) -> (i32, i32, i32) {
    %c0_i32 = arith.constant 0 : i32
    %c0_i32_0 = arith.constant 0 : i32
    %c0_i32_1 = arith.constant 0 : i32
    return %arg0, %c0_i32, %c0_i32_0 : i32, i32, i32
  }
}

</mosaic_0001>

<llo_original>
// kernel: tpu_custom_call.1
$region0: #{tpu_custom_call.1}
  #allocation0 [shape = 'u32[]', space=smem, size = 0x4, offset = 0x4, fixed_abs, tag = 'smem constant byte address 0x4 - core index']
  #allocation1 [shape = 'u32[144,128]{1,0:T(1,128)}', space=vmem, size = 0x12000, scoped, tag = 'internal scratch']
  %s0 = inlined_call_operand.hbm [shape: f32[2,8,4], index: 0, kind: input, shape index: {}]
  %s1 = inlined_call_operand.hbm [shape: bf16[4,32], index: 1, kind: input, shape index: {}]
  %s2 = inlined_call_operand.hbm [shape: f32[1,32], index: 2, kind: input, shape index: {}]
  %s3 = inlined_call_operand.hbm [shape: f32[1,32], index: 3, kind: input, shape index: {}]
  %s4 = inlined_call_operand.hbm [shape: f32[1,32], index: 4, kind: input, shape index: {}]
  %s5 = inlined_call_operand.hbm [shape: f32[2,8,32], index: 5, kind: output, shape index: {}]
  %s6 = sld [smem:[#allocation0]]
  $region73: #{tpu_custom_call.1} parent=0
    _
  %s8 = ssub.s32 1, %s6
  %s9 = scalar_select 0, %s8, %s6
  $region1: #{tpu_custom_call.1} parent=0
    #allocation2 [shape = 'u8[8192]{0}', space=vmem, size = 0x2000, scoped, tag = 'input window, operand 0']
    #allocation3 [shape = 's32[2]{0}', space=sflag, size = 0x8, scoped, tag = 'scoped memory for tpu_custom_call.1']
    #allocation4 [shape = 's32[2]{0}', space=sflag, size = 0x8, scoped, tag = 'scoped memory for tpu_custom_call.1']
    #allocation5 [shape = 'u8[1024]{0}', space=vmem, size = 0x400, scoped, tag = 'input window, operand 1, single buffered']
    #allocation6 [shape = 's32[1]{0}', space=sflag, size = 0x4, scoped, tag = 'scoped memory for tpu_custom_call.1']
    #allocation7 [shape = 'u8[512]{0}', space=vmem, size = 0x400, scoped, tag = 'input window, operand 2, single buffered']
    #allocation8 [shape = 'u8[512]{0}', space=vmem, size = 0x400, scoped, tag = 'input window, operand 3, single buffered']
    #allocation9 [shape = 's32[1]{0}', space=sflag, size = 0x4, scoped, tag = 'scoped memory for tpu_custom_call.1']
    #allocation10 [shape = 'u8[512]{0}', space=vmem, size = 0x400, scoped, tag = 'input window, operand 4, single buffered']
    #allocation11 [shape = 'u8[8192]{0}', space=vmem, size = 0x2000, scoped, tag = 'output window, operand 0']
    %10 = vsyncpa [#allocation3], 0
    %s11 = scalar_lea.sflag [#allocation3], 1
    %12 = vsyncpa %s11, 0
    %13 = vsyncpa [#allocation6], 0
    %14 = vsyncpa [#allocation9], 0
    %15 = vsyncpa [#allocation4], 0
    %s16 = scalar_lea.sflag [#allocation4], 1
    %17 = vsyncpa %s16, 0
    loop: start=0, step=1, limit=4
    $region2: #{tpu_custom_call.1} parent=1 // loop_pre_header
      _
    $region3: #{tpu_custom_call.1} parent=1 // loop_header
      %s19 = sphi 0, %s23
      %p20 = scmp.ge.s32.totalorder %s19, 4
      %s29 = sphi 0, %s31
      %s32 = sphi 0, %s29
      %s33 = sphi 0, %s32
      %s49 = sphi 0, %s33
      %s53 = sphi 0, %s53
      %s55 = sphi 0, %s53
      %s56 = sphi 0, %s55
      %s70 = sphi 0, %s56
      %s74 = sphi 0, %s74
      %s76 = sphi 0, %s74
      %s77 = sphi 0, %s76
      %s91 = sphi 0, %s77
      %s95 = sphi 0, %s95
      %s97 = sphi 0, %s95
      %s98 = sphi 0, %s97
      %s112 = sphi 0, %s98
      %s116 = sphi 0, %s116
      %s118 = sphi 0, %s116
      %s119 = sphi 0, %s118
      %s133 = sphi 0, %s119
      %s139 = sphi 0, %s141
      %s142 = sphi 0, %s139
      %s143 = sphi 0, %s142
      %s159 = sphi 0, %s143
    $region4: #{tpu_custom_call.1} parent=1 // loop_header_branch
      %22 = sbr.rel (%p20) target = $region8
    $region5: #{tpu_custom_call.1} parent=1 // loop_body
      %s24 = ssub.s32 %s19, 1
      %s25 = ssub.s32 %s19, 2
      %s26 = sadd.s32 %s19, 1
      %s27 = ssub.s32 %s19, %s26
      %p28 = scmp.eq.s32.totalorder %s27, 0
      %s30 = sadd.s32 %s29, 1
      %s31 = scalar_select %p28, %s29, %s30
      %p34 = pneg %p28
      %p35 = scmp.eq.s32.totalorder %s19, 1
      %p36 = por %p34, %p35
      %p37 = scmp.ne.s32.totalorder %s29, %s32
      %p38 = scmp.eq.s32.totalorder %s19, 0
      %p39 = por %p37, %p38
      %p40 = scmp.ne.s32.totalorder %s29, %s32
      %p41 = scmp.eq.s32.totalorder %s24, 1
      %p42 = por %p40, %p41
      %p43 = scmp.ne.s32.totalorder %s32, %s33
      %p44 = scmp.eq.s32.totalorder %s24, 0
      %p45 = por %p43, %p44
      %p46 = scmp.ne.s32.totalorder %s32, %s33
      %p47 = scmp.eq.s32.totalorder %s25, 1
      %p48 = por %p46, %p47
      %p50 = scmp.ne.s32.totalorder %s33, %s49
      %p51 = scmp.eq.s32.totalorder %s25, 0
      %p52 = por %p50, %p51
      %s54 = sadd.s32 %s53, 1
      %p57 = scmp.eq.s32.totalorder %s19, 1
      %p58 = scmp.ne.s32.totalorder %s53, %s55
      %p59 = scmp.eq.s32.totalorder %s19, 0
      %p60 = por %p58, %p59
      %p61 = scmp.ne.s32.totalorder %s53, %s55
      %p62 = scmp.eq.s32.totalorder %s24, 1
      %p63 = por %p61, %p62
      %p64 = scmp.ne.s32.totalorder %s55, %s56
      %p65 = scmp.eq.s32.totalorder %s24, 0
      %p66 = por %p64, %p65
      %p67 = scmp.ne.s32.totalorder %s55, %s56
      %p68 = scmp.eq.s32.totalorder %s25, 1
      %p69 = por %p67, %p68
      %p71 = scmp.ne.s32.totalorder %s56, %s70
      %p72 = scmp.eq.s32.totalorder %s25, 0
      %p73 = por %p71, %p72
      %s75 = sadd.s32 %s74, 1
      %p78 = scmp.eq.s32.totalorder %s19, 1
      %p79 = scmp.ne.s32.totalorder %s74, %s76
      %p80 = scmp.eq.s32.totalorder %s19, 0
      %p81 = por %p79, %p80
      %p82 = scmp.ne.s32.totalorder %s74, %s76
      %p83 = scmp.eq.s32.totalorder %s24, 1
      %p84 = por %p82, %p83
      %p85 = scmp.ne.s32.totalorder %s76, %s77
      %p86 = scmp.eq.s32.totalorder %s24, 0
      %p87 = por %p85, %p86
      %p88 = scmp.ne.s32.totalorder %s76, %s77
      %p89 = scmp.eq.s32.totalorder %s25, 1
      %p90 = por %p88, %p89
      %p92 = scmp.ne.s32.totalorder %s77, %s91
      %p93 = scmp.eq.s32.totalorder %s25, 0
      %p94 = por %p92, %p93
      %s96 = sadd.s32 %s95, 1
      %p99 = scmp.eq.s32.totalorder %s19, 1
      %p100 = scmp.ne.s32.totalorder %s95, %s97
      %p101 = scmp.eq.s32.totalorder %s19, 0
      %p102 = por %p100, %p101
      %p103 = scmp.ne.s32.totalorder %s95, %s97
      %p104 = scmp.eq.s32.totalorder %s24, 1
      %p105 = por %p103, %p104
      %p106 = scmp.ne.s32.totalorder %s97, %s98
      %p107 = scmp.eq.s32.totalorder %s24, 0
      %p108 = por %p106, %p107
      %p109 = scmp.ne.s32.totalorder %s97, %s98
      %p110 = scmp.eq.s32.totalorder %s25, 1
      %p111 = por %p109, %p110
      %p113 = scmp.ne.s32.totalorder %s98, %s112
      %p114 = scmp.eq.s32.totalorder %s25, 0
      %p115 = por %p113, %p114
      %s117 = sadd.s32 %s116, 1
      %p120 = scmp.eq.s32.totalorder %s19, 1
      %p121 = scmp.ne.s32.totalorder %s116, %s118
      %p122 = scmp.eq.s32.totalorder %s19, 0
      %p123 = por %p121, %p122
      %p124 = scmp.ne.s32.totalorder %s116, %s118
      %p125 = scmp.eq.s32.totalorder %s24, 1
      %p126 = por %p124, %p125
      %p127 = scmp.ne.s32.totalorder %s118, %s119
      %p128 = scmp.eq.s32.totalorder %s24, 0
      %p129 = por %p127, %p128
      %p130 = scmp.ne.s32.totalorder %s118, %s119
      %p131 = scmp.eq.s32.totalorder %s25, 1
      %p132 = por %p130, %p131
      %p134 = scmp.ne.s32.totalorder %s119, %s133
      %p135 = scmp.eq.s32.totalorder %s25, 0
      %p136 = por %p134, %p135
      %s137 = ssub.s32 %s19, %s26
      %p138 = scmp.eq.s32.totalorder %s137, 0
      %s140 = sadd.s32 %s139, 1
      %s141 = scalar_select %p138, %s139, %s140
      %p144 = pneg %p138
      %p145 = scmp.eq.s32.totalorder %s19, 1
      %p146 = por %p144, %p145
      %p147 = scmp.ne.s32.totalorder %s139, %s142
      %p148 = scmp.eq.s32.totalorder %s19, 0
      %p149 = por %p147, %p148
      %p150 = scmp.ne.s32.totalorder %s139, %s142
      %p151 = scmp.eq.s32.totalorder %s24, 1
      %p152 = por %p150, %p151
      %p153 = scmp.ne.s32.totalorder %s142, %s143
      %p154 = scmp.eq.s32.totalorder %s24, 0
      %p155 = por %p153, %p154
      %p156 = scmp.ne.s32.totalorder %s142, %s143
      %p157 = scmp.eq.s32.totalorder %s25, 1
      %p158 = por %p156, %p157
      %p160 = scmp.ne.s32.totalorder %s143, %s159
      %p161 = scmp.eq.s32.totalorder %s25, 0
      %p162 = por %p160, %p161
      %p163 = scmp.le.s32.totalorder 1, %s19
      %p164 = scmp.lt.s32.totalorder %s19, 3
      %p165 = pnand %p163, %p164
      %p166 = pneg %p165
      // Predicated region
      $region9: #{tpu_custom_call.1} parent=5 // pred_check
        _
      $region10: #{tpu_custom_call.1} parent=5 // pred_check_branch
        %168 = sbr.rel (%p165) target = $region12
      $region11: #{tpu_custom_call.1} parent=5 // pred_region
        %s169 = ssub.s32 %s19, 1
        // Predicated region
        $region13: #{tpu_custom_call.1} parent=11 // pred_check
          %p170 = pneg %p66
        $region14: #{tpu_custom_call.1} parent=11 // pred_check_branch
          %172 = sbr.rel (%p170) target = $region16
        $region15: #{tpu_custom_call.1} parent=11 // pred_region
          %s174 = ssub.s32 32, 32
          %175 = vsyncadd [#allocation6], %s174
          %s177 = sshll.u32 [#allocation5], 4
          %s178 = int_to_ptr.vmem [resolvable:$true] %s177
          %180 = dma.hbm_to_vmem [thread:$0]  %s1, 32, %s178, [#allocation6]
        $region16: #{tpu_custom_call.1} parent=11 // pred_fallthru
          _
        // Predicated region
        $region17: #{tpu_custom_call.1} parent=11 // pred_check
          %p181 = pneg %p87
        $region18: #{tpu_custom_call.1} parent=11 // pred_check_branch
          %183 = sbr.rel (%p181) target = $region20
        $region19: #{tpu_custom_call.1} parent=11 // pred_region
          %s185 = ssub.s32 16, 16
          %186 = vsyncadd [#allocation6], %s185
          %s188 = sshll.u32 [#allocation7], 4
          %s189 = int_to_ptr.vmem [resolvable:$true] %s188
          %191 = dma.hbm_to_vmem [thread:$0]  %s2, 16, %s189, [#allocation6]
        $region20: #{tpu_custom_call.1} parent=11 // pred_fallthru
          _
        // Predicated region
        $region21: #{tpu_custom_call.1} parent=11 // pred_check
          %p192 = pneg %p108
        $region22: #{tpu_custom_call.1} parent=11 // pred_check_branch
          %194 = sbr.rel (%p192) target = $region24
        $region23: #{tpu_custom_call.1} parent=11 // pred_region
          %s196 = ssub.s32 16, 16
          %197 = vsyncadd [#allocation9], %s196
          %s199 = sshll.u32 [#allocation8], 4
          %s200 = int_to_ptr.vmem [resolvable:$true] %s199
          %202 = dma.hbm_to_vmem [thread:$0]  %s3, 16, %s200, [#allocation9]
        $region24: #{tpu_custom_call.1} parent=11 // pred_fallthru
          _
        // Predicated region
        $region25: #{tpu_custom_call.1} parent=11 // pred_check
          %p203 = pneg %p129
        $region26: #{tpu_custom_call.1} parent=11 // pred_check_branch
          %205 = sbr.rel (%p203) target = $region28
        $region27: #{tpu_custom_call.1} parent=11 // pred_region
          %s207 = ssub.s32 16, 16
          %208 = vsyncadd [#allocation9], %s207
          %s210 = sshll.u32 [#allocation10], 4
          %s211 = int_to_ptr.vmem [resolvable:$true] %s210
          %213 = dma.hbm_to_vmem [thread:$0]  %s4, 16, %s211, [#allocation9]
        $region28: #{tpu_custom_call.1} parent=11 // pred_fallthru
          _
      $region12: #{tpu_custom_call.1} parent=5 // pred_fallthru
        _
      %p214 = scmp.lt.s32.totalorder %s19, 2
      // Predicated region
      $region29: #{tpu_custom_call.1} parent=5 // pred_check
        %p215 = pneg %p214
      $region30: #{tpu_custom_call.1} parent=5 // pred_check_branch
        %217 = sbr.rel (%p215) target = $region32
      $region31: #{tpu_custom_call.1} parent=5 // pred_region
        // Predicated region
        $region33: #{tpu_custom_call.1} parent=31 // pred_check
          %p218 = pneg %p39
        $region34: #{tpu_custom_call.1} parent=31 // pred_check_branch
          %220 = sbr.rel (%p218) target = $region36
        $region35: #{tpu_custom_call.1} parent=31 // pred_region
          %s221 = sand.u32 %s29, 1
          %s222 = scalar_lea.sflag [#allocation3], %s221
          %s223 = sand.u32 %s29, 1
          %s224 = smul.addr %s223, 8
          %s225 = scalar_lea.vmem [#allocation2], %s224
          %s227 = ssub.s32 128, 128
          %228 = vsyncadd %s222, %s227
          %s229 = smul.addr %s19, 128
          %s230 = scalar_lea.hbm %s0, %s229
          %s232 = sshll.u32 %s225, 4
          %s233 = int_to_ptr.vmem [resolvable:$true] %s232
          %235 = dma.hbm_to_vmem [thread:$0]  %s230, 128, %s233, %s222
        $region36: #{tpu_custom_call.1} parent=31 // pred_fallthru
          _
      $region32: #{tpu_custom_call.1} parent=5 // pred_fallthru
        _
      %p236 = scmp.le.s32.totalorder 1, %s19
      %p237 = scmp.lt.s32.totalorder %s19, 3
      %p238 = pnand %p236, %p237
      %p239 = pneg %p238
      // Predicated region
      $region37: #{tpu_custom_call.1} parent=5 // pred_check
        _
      $region38: #{tpu_custom_call.1} parent=5 // pred_check_branch
        %241 = sbr.rel (%p238) target = $region40
      $region39: #{tpu_custom_call.1} parent=5 // pred_region
        %s242 = ssub.s32 %s19, 1
        %s243 = sand.u32 %s32, 1
        %s244 = scalar_lea.sflag [#allocation3], %s243
        %s245 = sand.u32 %s32, 1
        %s246 = smul.addr %s245, 8
        %s247 = scalar_lea.vmem [#allocation2], %s246
        // Predicated region
        $region41: #{tpu_custom_call.1} parent=39 // pred_check
          %p248 = pneg %p45
        $region42: #{tpu_custom_call.1} parent=39 // pred_check_branch
          %250 = sbr.rel (%p248) target = $region44
        $region43: #{tpu_custom_call.1} parent=39 // pred_region
          %251 = dma.done %s244, 128
        $region44: #{tpu_custom_call.1} parent=39 // pred_fallthru
          _
        // Predicated region
        $region45: #{tpu_custom_call.1} parent=39 // pred_check
          %p252 = pneg %p66
        $region46: #{tpu_custom_call.1} parent=39 // pred_check_branch
          %254 = sbr.rel (%p252) target = $region48
        $region47: #{tpu_custom_call.1} parent=39 // pred_region
          %255 = dma.done [#allocation6], 32
        $region48: #{tpu_custom_call.1} parent=39 // pred_fallthru
          _
        // Predicated region
        $region49: #{tpu_custom_call.1} parent=39 // pred_check
          %p256 = pneg %p87
        $region50: #{tpu_custom_call.1} parent=39 // pred_check_branch
          %258 = sbr.rel (%p256) target = $region52
        $region51: #{tpu_custom_call.1} parent=39 // pred_region
          %259 = dma.done [#allocation6], 16
        $region52: #{tpu_custom_call.1} parent=39 // pred_fallthru
          _
        // Predicated region
        $region53: #{tpu_custom_call.1} parent=39 // pred_check
          %p260 = pneg %p108
        $region54: #{tpu_custom_call.1} parent=39 // pred_check_branch
          %262 = sbr.rel (%p260) target = $region56
        $region55: #{tpu_custom_call.1} parent=39 // pred_region
          %263 = dma.done [#allocation9], 16
        $region56: #{tpu_custom_call.1} parent=39 // pred_fallthru
          _
        // Predicated region
        $region57: #{tpu_custom_call.1} parent=39 // pred_check
          %p264 = pneg %p129
        $region58: #{tpu_custom_call.1} parent=39 // pred_check_branch
          %266 = sbr.rel (%p264) target = $region60
        $region59: #{tpu_custom_call.1} parent=39 // pred_region
          %267 = dma.done [#allocation9], 16
        $region60: #{tpu_custom_call.1} parent=39 // pred_fallthru
          _
        %s268 = sand.u32 %s32, 1
        %s269 = scalar_lea.sflag [#allocation3], %s268
        %s270 = sand.u32 %s32, 1
        %s271 = smul.addr %s270, 8
        %s272 = scalar_lea.vmem [#allocation2], %s271
        %p273 = pneg %p45
        %p274 = pneg %p42
        %p275 = pneg %p66
        %p276 = pneg %p63
        %p277 = pneg %p87
        %p278 = pneg %p84
        %p279 = pneg %p108
        %p280 = pneg %p105
        %p281 = pneg %p129
        %p282 = pneg %p126
        %p283 = pneg %p155
        %p284 = pneg %p152
        %s285 = sand.u32 %s142, 1
        %s286 = scalar_lea.sflag [#allocation4], %s285
        %s287 = sand.u32 %s142, 1
        %s288 = smul.addr %s287, 8
        %s289 = scalar_lea.vmem [#allocation11], %s288
        %v291 = vld [vmem:[%s247] sm:$0xff]
        %v292 = vld [vmem:[#allocation5] sm:$0x3]
        %v293 = vpack.c.bf16 %v291, %v291
        %v294 = vld [vmem:[#allocation7] sm:$0x1]
        %v296 = vlaneseq
        %v297 = vshrl.u32 %v296, 7
        %v298 = vsub.s32 0, %v297
        %v299 = vrot.slane %v294, %v298
        %vm301 = vcmask 31744
        %v303 = vsel %vm301, %v293, 0
        %vm305 = vcmask 1041408
        %v307 = vsel %vm305, %v292, 0
        %309 = vmatprep.subr.bf16.mxu0 0
        %310 = vmatpush1.bf16.msra.mxu0 %v307
        %311 = vmatprep.subr.bf16.mxu0 0
        %312 = vmatpush1.bf16.msra.mxu0 0
        %313 = vmatprep.subr.bf16.mxu0 0
        %314 = vmatpush1.bf16.msra.mxu0 0
        %315 = vmatprep.subr.bf16.mxu0 0
        %316 = vmatpush1.bf16.msra.mxu0 0
        %317 = vmatprep.subr.bf16.mxu0 0
        %318 = vmatpush1.bf16.msra.mxu0 0
        %319 = vmatprep.subr.bf16.mxu0 0
        %320 = vmatpush1.bf16.msra.mxu0 0
        %321 = vmatprep.subr.bf16.mxu0 0
        %322 = vmatpush1.bf16.msra.mxu0 0
        %323 = vmatprep.subr.bf16.mxu0 0
        %324 = vmatpush1.bf16.msra.mxu0 0
        %325 = vmatprep.subr.bf16.mxu0 0
        %326 = vmatpush1.bf16.msra.mxu0 0
        %327 = vmatprep.subr.bf16.mxu0 0
        %328 = vmatpush1.bf16.msra.mxu0 0
        %329 = vmatprep.subr.bf16.mxu0 0
        %330 = vmatpush1.bf16.msra.mxu0 0
        %331 = vmatprep.subr.bf16.mxu0 0
        %332 = vmatpush1.bf16.msra.mxu0 0
        %333 = vmatprep.subr.bf16.mxu0 0
        %334 = vmatpush1.bf16.msra.mxu0 0
        %335 = vmatprep.subr.bf16.mxu0 0
        %336 = vmatpush1.bf16.msra.mxu0 0
        %337 = vmatprep.subr.bf16.mxu0 0
        %338 = vmatpush1.bf16.msra.mxu0 0
        %339 = vmatprep.subr.bf16.mxu0 0
        %340 = vmatpush1.bf16.msra.mxu0 0
        %341 = vmatprep.mubr.bf16.mxu0 0
        %342 = vmatmul.mubr.bf16.gmra.mrb[0].mxu0 %v303
        %v343 = vpop.f32.mrb[0].mxu0
        %v344 = vadd.f32 %v299, %v343
        %v345 = vpop.f32.mrb[0].mxu0
        %v346 = vpop.f32.mrb[0].mxu0
        %v347 = vpop.f32.mrb[0].mxu0
        %348 = vdwg.mxu0
        %vm349 = vcmask 261120
        %v350 = vsel %vm349, %v344, 0.0
        %351 = vadd.xlane.f32.xlu0 %v350
        %v352 = vpop.xlane.xlu0 %351
        %v353 = vrcp.pop 32.0
        %v354 = vmul.f32 %v352, %v353
        %v355 = vsub.f32 %v344, %v354
        %v356 = vmul.f32 %v355, %v355
        %v357 = vsel %vm349, %v356, 0.0
        %358 = vadd.xlane.f32.xlu0 %v357
        %v359 = vpop.xlane.xlu0 %358
        %v360 = vmul.f32 %v359, %v353
        %v361 = vadd.f32 %v360, 1e-05
        %v362 = vrsqrt.pop %v361
        %v363 = vmul.f32 %v355, %v362
        %v364 = vld [vmem:[#allocation8] sm:$0x1]
        %v366 = vlaneseq
        %v367 = vshrl.u32 %v366, 7
        %v368 = vsub.s32 0, %v367
        %v369 = vrot.slane %v364, %v368
        %v371 = vmul.f32 %v363, %v369
        %v372 = vld [vmem:[#allocation10] sm:$0x1]
        %v374 = vlaneseq
        %v375 = vshrl.u32 %v374, 7
        %v376 = vsub.s32 0, %v375
        %v377 = vrot.slane %v372, %v376
        %v379 = vadd.f32 %v371, %v377
        %380 = vst.msk [vmem:[%s289] sm:$0xff] %vm349, %v379
        %s381 = sand.u32 %s142, 1
        %s382 = scalar_lea.sflag [#allocation4], %s381
        %s383 = sand.u32 %s142, 1
        %s384 = smul.addr %s383, 8
        %s385 = scalar_lea.vmem [#allocation11], %s384
        // Predicated region
        $region61: #{tpu_custom_call.1} parent=39 // pred_check
          %p386 = pneg %p152
        $region62: #{tpu_custom_call.1} parent=39 // pred_check_branch
          %388 = sbr.rel (%p386) target = $region64
        $region63: #{tpu_custom_call.1} parent=39 // pred_region
          %s390 = ssub.s32 128, 128
          %391 = vsyncadd %s382, %s390
          %s392 = smul.addr %s24, 128
          %s393 = scalar_lea.hbm %s5, %s392
          %s395 = sshll.u32 %s385, 4
          %s396 = int_to_ptr.vmem [resolvable:$true] %s395
          %398 = dma.vmem_to_hbm [thread:$0]  %s396, 128, %s393, %s382
        $region64: #{tpu_custom_call.1} parent=39 // pred_fallthru
          _
      $region40: #{tpu_custom_call.1} parent=5 // pred_fallthru
        _
      %p399 = scmp.le.s32.totalorder 2, %s19
      // Predicated region
      $region65: #{tpu_custom_call.1} parent=5 // pred_check
        %p400 = pneg %p399
      $region66: #{tpu_custom_call.1} parent=5 // pred_check_branch
        %402 = sbr.rel (%p400) target = $region68
      $region67: #{tpu_custom_call.1} parent=5 // pred_region
        %s403 = ssub.s32 %s19, 2
        // Predicated region
        $region69: #{tpu_custom_call.1} parent=67 // pred_check
          %p404 = pneg %p158
        $region70: #{tpu_custom_call.1} parent=67 // pred_check_branch
          %406 = sbr.rel (%p404) target = $region72
        $region71: #{tpu_custom_call.1} parent=67 // pred_region
          %s407 = sand.u32 %s143, 1
          %s408 = scalar_lea.sflag [#allocation4], %s407
          %s409 = sand.u32 %s143, 1
          %s410 = smul.addr %s409, 8
          %s411 = scalar_lea.vmem [#allocation11], %s410
          %412 = dma.done %s408, 128
        $region72: #{tpu_custom_call.1} parent=67 // pred_fallthru
          _
      $region68: #{tpu_custom_call.1} parent=5 // pred_fallthru
        _
    $region6: #{tpu_custom_call.1} parent=1 // loop_footer
      %s23 = sadd.s32 1, %s19
    $region7: #{tpu_custom_call.1} parent=1 // loop_footer_branch
      %18 = sbr.rel target = $region3
    $region8: #{tpu_custom_call.1} parent=1 // loop_exit
      _
    %413 = vsyncpa [#allocation3], 1
    %s414 = scalar_lea.sflag [#allocation3], 1
    %415 = vsyncpa %s414, 1
    %416 = vsyncpa [#allocation6], 1
    %417 = vsyncpa [#allocation9], 1
    %418 = vsyncpa [#allocation4], 1
    %s419 = scalar_lea.sflag [#allocation4], 1
    %420 = vsyncpa %s419, 1

</llo_original>
